<compile_context>
chip_gen: v7x
topology: tpu7x:2x2x1
jax: 0.10.0
libtpu: 0.0.40
codegen_flags: <defaults>
</compile_context>

<pallas_src>
import jax
import jax.numpy as jnp
from jax.experimental import pallas as pl
from jax.experimental.pallas import tpu as pltpu

CONFIDENCE_MARGIN = 2.0
_LANES = 128
_SUBLANES = 8


def _deviation_loss_kernel(stats_ref, y_pred_ref, y_true_ref, partial_ref):
    """One (tm, 128) row-tile of the deviation loss.

    stats_ref   : SMEM (2,) float32 -> [ref_mean, 1/ref_std]  (scalar prefetch)
    y_pred_ref  : VMEM (tm, 128) float32 tile of predictions
    y_true_ref  : VMEM (tm, 128) float32 tile of labels (0/1)
    partial_ref : VMEM (1, 8, 128) float32 per-core partial-sum accumulator
                  (same output block across the inner 'arbitrary' axis, so it
                  stays resident in VMEM; summed + normalized in the wrapper)
    """
    i = pl.program_id(1)

    @pl.when(i == 0)
    def _():
        partial_ref[...] = jnp.zeros_like(partial_ref)

    ref_mean = stats_ref[0]
    inv_std = stats_ref[1]

    y_pred = y_pred_ref[...]
    y_true = y_true_ref[...]

    # dev = (y_pred - mean) * (1/std)   (multiply instead of per-element divide)
    dev = (y_pred - ref_mean) * inv_std

    # tanh(dev) ** 8 via repeated squaring (3 VPU multiplies).
    t = jnp.tanh(dev)
    t2 = t * t
    t4 = t2 * t2
    inlier = t4 * t4

    # tanh(2 - dev) ** 2
    u = jnp.tanh(CONFIDENCE_MARGIN - dev)
    outlier = u * u

    # (1 - y_true)*inlier + y_true*outlier  ==  inlier + y_true*(outlier - inlier)
    loss = inlier + y_true * (outlier - inlier)

    # vreg-shaped accumulation: elementwise adds of whole (8,128) vreg tiles
    # (VPU slot), no per-tile cross-lane reduction or masked scalar store.
    partial_ref[0] += loss.reshape(-1, _SUBLANES, _LANES).sum(axis=0)


def deviation_loss(y_pred, y_true, key, *, tile_rows=2048):
    """Pallas implementation of DeviationLoss.forward.

    y_pred, y_true : float32 arrays of identical shape (flattened internally to
                     a lane-dense (M, 128) slab; total size must be a multiple
                     of 8*128).
    key            : PRNG key for the synthetic reference Gaussian sample.
    Returns a scalar float32 (the mean loss).
    """
    y_pred = jnp.asarray(y_pred, jnp.float32)
    y_true = jnp.asarray(y_true, jnp.float32)
    assert y_pred.shape == y_true.shape

    # --- glue: reference Gaussian statistics (matches torch.normal(0.1, 2.0, [5000])) ---
    # TODO(synk): exact bit-parity with torch.normal RNG is not reproducible in JAX.
    ref = 0.1 + 2.0 * jax.random.normal(key, (5000,), dtype=jnp.float32)
    ref_mean = jnp.mean(ref)
    ref_std = jnp.std(ref, ddof=1)  # torch.std is unbiased by default
    stats = jnp.stack([ref_mean, 1.0 / ref_std]).astype(jnp.float32)

    # --- glue: flatten to a lane-dense 2-D slab (M, 128) ---
    n_elems = y_pred.size
    assert n_elems % (_SUBLANES * _LANES) == 0, "example sizes are (8*128)-multiples"
    M = n_elems // _LANES
    yp2 = y_pred.reshape(M, _LANES)
    yt2 = y_true.reshape(M, _LANES)

    # Split the row range across (up to) two TensorCores; harmless on 1-TC chips.
    n_split = 2 if (M // _SUBLANES) % 2 == 0 else 1
    m_split = M // n_split

    # Largest row-tile <= tile_rows that is a multiple of 8 and divides m_split.
    # tm=2048 -> 2 inputs x 2 buffers x 1 MiB = 4 MiB VMEM: safe on v5e/v6e/v7x.
    tm = max(_SUBLANES, (min(tile_rows, m_split) // _SUBLANES) * _SUBLANES)
    while m_split % tm != 0:
        tm -= _SUBLANES
    tiles_per_split = m_split // tm

    grid = (n_split, tiles_per_split)

    def in_map(c, i, stats):
        return (c * tiles_per_split + i, 0)

    partials = pl.pallas_call(
        _deviation_loss_kernel,
        out_shape=jax.ShapeDtypeStruct((n_split, _SUBLANES, _LANES), jnp.float32),
        grid_spec=pltpu.PrefetchScalarGridSpec(
            num_scalar_prefetch=1,
            grid=grid,
            in_specs=[
                pl.BlockSpec((tm, _LANES), in_map),
                pl.BlockSpec((tm, _LANES), in_map),
            ],
            out_specs=pl.BlockSpec((1, _SUBLANES, _LANES),
                                   lambda c, i, stats: (c, 0, 0)),
        ),
        compiler_params=pltpu.CompilerParams(
            dimension_semantics=("parallel", "arbitrary"),
        ),
    )(stats, yp2, yt2)

    # Single tiny cross-lane reduce + normalization outside the hot loop.
    return jnp.sum(partials) / jnp.float32(n_elems)


def _reference_loss(y_pred, y_true, key):
    """Pure-JAX reference for correctness checking."""
    ref = 0.1 + 2.0 * jax.random.normal(key, (5000,), dtype=jnp.float32)
    dev = (y_pred - jnp.mean(ref)) / jnp.std(ref, ddof=1)
    inlier = jnp.tanh(dev) ** 8
    outlier = jnp.tanh(CONFIDENCE_MARGIN - dev) ** 2
    loss = (1.0 - y_true) * inlier + y_true * outlier
    return jnp.mean(loss)


if __name__ == "__main__":
    key = jax.random.PRNGKey(0)
    k_ref, k_pred, k_true = jax.random.split(key, 3)

    # Small shapes: 32 "samples" x 128 score entries (flattenable scores).
    M, N = 32, 128
    y_pred = jax.random.normal(k_pred, (M, N), dtype=jnp.float32)
    y_true = (jax.random.uniform(k_true, (M, N)) > 0.9).astype(jnp.float32)

    out = jax.block_until_ready(deviation_loss(y_pred, y_true, k_ref))
    ref = jax.block_until_ready(_reference_loss(y_pred, y_true, k_ref))
    assert jnp.allclose(out, ref, rtol=1e-5, atol=1e-6), (out, ref)

    print("KERNEL_OK")
</pallas_src>

<mosaic_0001>
module attributes {stable_mosaic.version = 11 : i64} {
  func.func @_deviation_loss_kernel(%arg0: i32, %arg1: i32, %arg2: memref<2xf32, #tpu.memory_space<smem>>, %arg3: memref<16x128xf32, #tpu.memory_space<vmem>>, %arg4: memref<16x128xf32, #tpu.memory_space<vmem>>, %arg5: memref<1x8x128xf32, #tpu.memory_space<vmem>>) attributes {dimension_semantics = [#tpu.dimension_semantics<parallel>, #tpu.dimension_semantics<arbitrary>], iteration_bounds = array<i64: 2, 1>, scalar_prefetch = 1 : i64, scratch_operands = 0 : i64, tpu.core_type = #tpu.core_type<tc>, window_params = [{transform_indices = @transform_0, window_bounds = array<i64: 16, 128>}, {transform_indices = @transform_1, window_bounds = array<i64: 16, 128>}, {transform_indices = @transform_2, window_bounds = array<i64: 1, 8, 128>}]} {
    %c0_i32 = arith.constant 0 : i32
    %0 = arith.cmpi eq, %arg1, %c0_i32 : i32
    %1 = arith.extui %0 : i1 to i32
    %c0_i32_0 = arith.constant 0 : i32
    %2 = arith.cmpi ne, %1, %c0_i32_0 : i32
    scf.if %2 {
      %cst_12 = arith.constant 0.000000e+00 : f32
      %30 = vector.broadcast %cst_12 : f32 to vector<1x8x128xf32>
      %c0_13 = arith.constant 0 : index
      %c0_14 = arith.constant 0 : index
      %c0_15 = arith.constant 0 : index
      %31 = vector.load %arg5[%c0_13, %c0_14, %c0_15] : memref<1x8x128xf32, #tpu.memory_space<vmem>>, vector<1x8x128xf32>
      tpu.vector_store %arg5[%c0_13, %c0_14, %c0_15], %30 {strides = array<i32>} : memref<1x8x128xf32, #tpu.memory_space<vmem>>, vector<1x8x128xf32>,
    } else {
    }
    %c0 = arith.constant 0 : index
    %3 = memref.load %arg2[%c0] : memref<2xf32, #tpu.memory_space<smem>>
    %c1 = arith.constant 1 : index
    %4 = memref.load %arg2[%c1] : memref<2xf32, #tpu.memory_space<smem>>
    %c0_1 = arith.constant 0 : index
    %c0_2 = arith.constant 0 : index
    %5 = vector.load %arg3[%c0_1, %c0_2] : memref<16x128xf32, #tpu.memory_space<vmem>>, vector<16x128xf32>
    %c0_3 = arith.constant 0 : index
    %c0_4 = arith.constant 0 : index
    %6 = vector.load %arg4[%c0_3, %c0_4] : memref<16x128xf32, #tpu.memory_space<vmem>>, vector<16x128xf32>
    %7 = vector.broadcast %3 : f32 to vector<16x128xf32>
    %8 = arith.subf %5, %7 : vector<16x128xf32>
    %9 = vector.broadcast %4 : f32 to vector<16x128xf32>
    %10 = arith.mulf %8, %9 : vector<16x128xf32>
    %11 = math.tanh %10 : vector<16x128xf32>
    %12 = arith.mulf %11, %11 : vector<16x128xf32>
    %13 = arith.mulf %12, %12 : vector<16x128xf32>
    %14 = arith.mulf %13, %13 : vector<16x128xf32>
    %cst = arith.constant 2.000000e+00 : f32
    %15 = vector.broadcast %cst : f32 to vector<16x128xf32>
    %16 = arith.subf %15, %10 : vector<16x128xf32>
    %17 = math.tanh %16 : vector<16x128xf32>
    %18 = arith.mulf %17, %17 : vector<16x128xf32>
    %19 = arith.subf %18, %14 : vector<16x128xf32>
    %20 = arith.mulf %6, %19 : vector<16x128xf32>
    %21 = arith.addf %14, %20 : vector<16x128xf32>
    %c0_5 = arith.constant 0 : index
    %c0_6 = arith.constant 0 : index
    %c0_7 = arith.constant 0 : index
    %22 = vector.load %arg5[%c0_5, %c0_6, %c0_7] : memref<1x8x128xf32, #tpu.memory_space<vmem>>, vector<1x8x128xf32>
    %23 = vector.shape_cast %22 : vector<1x8x128xf32> to vector<8x128xf32>
    %24 = vector.shape_cast %21 : vector<16x128xf32> to vector<2x8x128xf32>
    %cst_8 = arith.constant dense<0.000000e+00> : vector<8x128xf32>
    %25 = vector.multi_reduction <add>, %24, %cst_8 [0] : vector<2x8x128xf32> to vector<8x128xf32>
    %26 = arith.addf %23, %25 : vector<8x128xf32>
    %c0_9 = arith.constant 0 : index
    %c0_10 = arith.constant 0 : index
    %c0_11 = arith.constant 0 : index
    %27 = vector.load %arg5[%c0_9, %c0_10, %c0_11] : memref<1x8x128xf32, #tpu.memory_space<vmem>>, vector<1x8x128xf32>
    %28 = vector.shape_cast %27 : vector<1x8x128xf32> to vector<8x128xf32>
    %29 = vector.shape_cast %26 : vector<8x128xf32> to vector<1x8x128xf32>
    tpu.vector_store %arg5[%c0_9, %c0_10, %c0_11], %29 {strides = array<i32>} : memref<1x8x128xf32, #tpu.memory_space<vmem>>, vector<1x8x128xf32>,
    return
  }
  func.func @transform_0(%arg0: i32, %arg1: i32, %arg2: memref<2xf32, #tpu.memory_space<smem>>) -> (i32, i32) {
    %c1_i32 = arith.constant 1 : i32
    %0 = arith.muli %arg0, %c1_i32 : i32
    %1 = arith.addi %0, %arg1 : i32
    %c0_i32 = arith.constant 0 : i32
    %c0_i32_0 = arith.constant 0 : i32
    return %1, %c0_i32 : i32, i32
  }
  func.func @transform_1(%arg0: i32, %arg1: i32, %arg2: memref<2xf32, #tpu.memory_space<smem>>) -> (i32, i32) {
    %c1_i32 = arith.constant 1 : i32
    %0 = arith.muli %arg0, %c1_i32 : i32
    %1 = arith.addi %0, %arg1 : i32
    %c0_i32 = arith.constant 0 : i32
    %c0_i32_0 = arith.constant 0 : i32
    return %1, %c0_i32 : i32, i32
  }
  func.func @transform_2(%arg0: i32, %arg1: i32, %arg2: memref<2xf32, #tpu.memory_space<smem>>) -> (i32, i32, i32) {
    %c0_i32 = arith.constant 0 : i32
    %c0_i32_0 = arith.constant 0 : i32
    %c0_i32_1 = arith.constant 0 : i32
    return %arg0, %c0_i32, %c0_i32_0 : i32, i32, i32
  }
}

</mosaic_0001>

<llo_original>
// kernel: tpu_custom_call.1
$region0: #{tpu_custom_call.1}
  #allocation0 [shape = 'u32[]', space=smem, size = 0x4, offset = 0x4, fixed_abs, tag = 'smem constant byte address 0x4 - core index']
  #allocation1 [shape = 'u32[144,128]{1,0:T(1,128)}', space=vmem, size = 0x12000, scoped, tag = 'internal scratch']
  #allocation2 [shape = 's32[1]{0}', space=sflag, size = 0x4, scoped, tag = 'scoped memory for tpu_custom_call.1']
  #allocation3 [shape = 'u8[512]{0}', space=smem, size = 0x200, scoped, tag = 'prefetched SMEM operand 0']
  %s0 = inlined_call_operand.hbm [shape: f32[2], index: 0, kind: input, shape index: {}]
  %s1 = inlined_call_operand.hbm [shape: f32[32,128], index: 1, kind: input, shape index: {}]
  %s2 = inlined_call_operand.hbm [shape: f32[32,128], index: 2, kind: input, shape index: {}]
  %s3 = inlined_call_operand.hbm [shape: f32[2,8,128], index: 3, kind: output, shape index: {}]
  %s4 = sld [smem:[#allocation0]]
  $region53: #{tpu_custom_call.1} parent=0
    _
  %s6 = ssub.s32 1, %s4
  %s7 = scalar_select 0, %s6, %s4
  %9 = dma.hbm_to_smem %s0, 16, [#allocation3], [#allocation2]
  %10 = dma.done [#allocation2], 16
  %11 = sfence
  $region1: #{tpu_custom_call.1} parent=0
    #allocation4 [shape = 'u8[16384]{0}', space=vmem, size = 0x4000, scoped, tag = 'input window, operand 1']
    #allocation5 [shape = 's32[2]{0}', space=sflag, size = 0x8, scoped, tag = 'scoped memory for tpu_custom_call.1']
    #allocation6 [shape = 's32[2]{0}', space=sflag, size = 0x8, scoped, tag = 'scoped memory for tpu_custom_call.1']
    #allocation7 [shape = 'u8[16384]{0}', space=vmem, size = 0x4000, scoped, tag = 'input window, operand 2']
    #allocation8 [shape = 's32[2]{0}', space=sflag, size = 0x8, scoped, tag = 'scoped memory for tpu_custom_call.1']
    #allocation9 [shape = 'u8[8192]{0}', space=vmem, size = 0x2000, scoped, tag = 'output window, operand 0']
    %12 = vsyncpa [#allocation5], 0
    %s13 = scalar_lea.sflag [#allocation5], 1
    %14 = vsyncpa %s13, 0
    %15 = vsyncpa [#allocation8], 0
    %s16 = scalar_lea.sflag [#allocation8], 1
    %17 = vsyncpa %s16, 0
    %18 = vsyncpa [#allocation6], 0
    %s19 = scalar_lea.sflag [#allocation6], 1
    %20 = vsyncpa %s19, 0
    loop: start=0, step=1, limit=4
    $region2: #{tpu_custom_call.1} parent=1 // loop_pre_header
      _
    $region3: #{tpu_custom_call.1} parent=1 // loop_header
      %s22 = sphi 0, %s26
      %p23 = scmp.ge.s32.totalorder %s22, 4
      %s29 = sphi 0, %s41
      %s30 = sphi 0, %s37
      %s31 = sphi 0, %s29
      %s32 = sphi 0, %s30
      %s33 = sphi 0, %s31
      %s34 = sphi 0, %s32
      %s46 = sphi 0, %s48
      %s49 = sphi 0, %s46
      %s50 = sphi 0, %s49
      %s66 = sphi 0, %s50
      %s74 = sphi 0, %s76
      %s77 = sphi 0, %s74
      %s78 = sphi 0, %s77
      %s94 = sphi 0, %s78
      %s100 = sphi 0, %s102
      %s103 = sphi 0, %s100
      %s104 = sphi 0, %s103
      %s120 = sphi 0, %s104
    $region4: #{tpu_custom_call.1} parent=1 // loop_header_branch
      %25 = sbr.rel (%p23) target = $region8
    $region5: #{tpu_custom_call.1} parent=1 // loop_body
      %s27 = ssub.s32 %s22, 1
      %s28 = ssub.s32 %s22, 2
      %s35 = sadd.s32 1, %s30
      %p36 = scmp.ge.s32.totalorder %s35, 1
      %s37 = scalar_select %p36, 0, %s35
      %s38 = sadd.s32 1, %s29
      %s39 = scalar_select %p36, %s38, %s29
      %p40 = scmp.ge.s32.totalorder %s39, 2
      %s41 = scalar_select %p40, 0, %s39
      %s42 = sadd.s32 %s29, %s30
      %s43 = sadd.s32 %s41, %s37
      %s44 = ssub.s32 %s42, %s43
      %p45 = scmp.eq.s32.totalorder %s44, 0
      %s47 = sadd.s32 %s46, 1
      %s48 = scalar_select %p45, %s46, %s47
      %p51 = pneg %p45
      %p52 = scmp.eq.s32.totalorder %s22, 1
      %p53 = por %p51, %p52
      %p54 = scmp.ne.s32.totalorder %s46, %s49
      %p55 = scmp.eq.s32.totalorder %s22, 0
      %p56 = por %p54, %p55
      %p57 = scmp.ne.s32.totalorder %s46, %s49
      %p58 = scmp.eq.s32.totalorder %s27, 1
      %p59 = por %p57, %p58
      %p60 = scmp.ne.s32.totalorder %s49, %s50
      %p61 = scmp.eq.s32.totalorder %s27, 0
      %p62 = por %p60, %p61
      %p63 = scmp.ne.s32.totalorder %s49, %s50
      %p64 = scmp.eq.s32.totalorder %s28, 1
      %p65 = por %p63, %p64
      %p67 = scmp.ne.s32.totalorder %s50, %s66
      %p68 = scmp.eq.s32.totalorder %s28, 0
      %p69 = por %p67, %p68
      %s70 = sadd.s32 %s29, %s30
      %s71 = sadd.s32 %s41, %s37
      %s72 = ssub.s32 %s70, %s71
      %p73 = scmp.eq.s32.totalorder %s72, 0
      %s75 = sadd.s32 %s74, 1
      %s76 = scalar_select %p73, %s74, %s75
      %p79 = pneg %p73
      %p80 = scmp.eq.s32.totalorder %s22, 1
      %p81 = por %p79, %p80
      %p82 = scmp.ne.s32.totalorder %s74, %s77
      %p83 = scmp.eq.s32.totalorder %s22, 0
      %p84 = por %p82, %p83
      %p85 = scmp.ne.s32.totalorder %s74, %s77
      %p86 = scmp.eq.s32.totalorder %s27, 1
      %p87 = por %p85, %p86
      %p88 = scmp.ne.s32.totalorder %s77, %s78
      %p89 = scmp.eq.s32.totalorder %s27, 0
      %p90 = por %p88, %p89
      %p91 = scmp.ne.s32.totalorder %s77, %s78
      %p92 = scmp.eq.s32.totalorder %s28, 1
      %p93 = por %p91, %p92
      %p95 = scmp.ne.s32.totalorder %s78, %s94
      %p96 = scmp.eq.s32.totalorder %s28, 0
      %p97 = por %p95, %p96
      %s98 = ssub.s32 %s29, %s41
      %p99 = scmp.eq.s32.totalorder %s98, 0
      %s101 = sadd.s32 %s100, 1
      %s102 = scalar_select %p99, %s100, %s101
      %p105 = pneg %p99
      %p106 = scmp.eq.s32.totalorder %s22, 1
      %p107 = por %p105, %p106
      %p108 = scmp.ne.s32.totalorder %s100, %s103
      %p109 = scmp.eq.s32.totalorder %s22, 0
      %p110 = por %p108, %p109
      %p111 = scmp.ne.s32.totalorder %s100, %s103
      %p112 = scmp.eq.s32.totalorder %s27, 1
      %p113 = por %p111, %p112
      %p114 = scmp.ne.s32.totalorder %s103, %s104
      %p115 = scmp.eq.s32.totalorder %s27, 0
      %p116 = por %p114, %p115
      %p117 = scmp.ne.s32.totalorder %s103, %s104
      %p118 = scmp.eq.s32.totalorder %s28, 1
      %p119 = por %p117, %p118
      %p121 = scmp.ne.s32.totalorder %s104, %s120
      %p122 = scmp.eq.s32.totalorder %s28, 0
      %p123 = por %p121, %p122
      %p124 = scmp.le.s32.totalorder 1, %s22
      %p125 = scmp.lt.s32.totalorder %s22, 3
      %p126 = pnand %p124, %p125
      %p127 = pneg %p126
      // Predicated region
      $region9: #{tpu_custom_call.1} parent=5 // pred_check
        _
      $region10: #{tpu_custom_call.1} parent=5 // pred_check_branch
        %129 = sbr.rel (%p126) target = $region12
      $region11: #{tpu_custom_call.1} parent=5 // pred_region
        %s130 = ssub.s32 %s22, 1
      $region12: #{tpu_custom_call.1} parent=5 // pred_fallthru
        _
      %p131 = scmp.lt.s32.totalorder %s22, 2
      // Predicated region
      $region13: #{tpu_custom_call.1} parent=5 // pred_check
        %p132 = pneg %p131
      $region14: #{tpu_custom_call.1} parent=5 // pred_check_branch
        %134 = sbr.rel (%p132) target = $region16
      $region15: #{tpu_custom_call.1} parent=5 // pred_region
        // Predicated region
        $region17: #{tpu_custom_call.1} parent=15 // pred_check
          %p135 = pneg %p56
        $region18: #{tpu_custom_call.1} parent=15 // pred_check_branch
          %137 = sbr.rel (%p135) target = $region20
        $region19: #{tpu_custom_call.1} parent=15 // pred_region
          %s138 = sand.u32 %s46, 1
          %s139 = scalar_lea.sflag [#allocation5], %s138
          %s140 = sand.u32 %s46, 1
          %s141 = smul.addr %s140, 16
          %s142 = scalar_lea.vmem [#allocation4], %s141
          %s143 = sadd.s32 %s29, %s30
          %s144 = smul.u32 2, %s143
          %s146 = ssub.s32 256, 256
          %147 = vsyncadd %s139, %s146
          %s148 = smul.addr %s144, 128
          %s149 = scalar_lea.hbm %s1, %s148
          %s150 = sshll.u32 %s142, 4
          %s151 = int_to_ptr.vmem [resolvable:$true] %s150
          %156 = dma.hbm_to_vmem [thread:$0]  %s149, 256, %s151, %s139, 128, 128, 8
        $region20: #{tpu_custom_call.1} parent=15 // pred_fallthru
          _
        // Predicated region
        $region21: #{tpu_custom_call.1} parent=15 // pred_check
          %p157 = pneg %p84
        $region22: #{tpu_custom_call.1} parent=15 // pred_check_branch
          %159 = sbr.rel (%p157) target = $region24
        $region23: #{tpu_custom_call.1} parent=15 // pred_region
          %s160 = sand.u32 %s74, 1
          %s161 = scalar_lea.sflag [#allocation8], %s160
          %s162 = sand.u32 %s74, 1
          %s163 = smul.addr %s162, 16
          %s164 = scalar_lea.vmem [#allocation7], %s163
          %s165 = sadd.s32 %s29, %s30
          %s166 = smul.u32 2, %s165
          %s168 = ssub.s32 256, 256
          %169 = vsyncadd %s161, %s168
          %s170 = smul.addr %s166, 128
          %s171 = scalar_lea.hbm %s2, %s170
          %s172 = sshll.u32 %s164, 4
          %s173 = int_to_ptr.vmem [resolvable:$true] %s172
          %178 = dma.hbm_to_vmem [thread:$0]  %s171, 256, %s173, %s161, 128, 128, 8
        $region24: #{tpu_custom_call.1} parent=15 // pred_fallthru
          _
      $region16: #{tpu_custom_call.1} parent=5 // pred_fallthru
        _
      %p179 = scmp.le.s32.totalorder 1, %s22
      %p180 = scmp.lt.s32.totalorder %s22, 3
      %p181 = pnand %p179, %p180
      %p182 = pneg %p181
      // Predicated region
      $region25: #{tpu_custom_call.1} parent=5 // pred_check
        _
      $region26: #{tpu_custom_call.1} parent=5 // pred_check_branch
        %184 = sbr.rel (%p181) target = $region28
      $region27: #{tpu_custom_call.1} parent=5 // pred_region
        %s185 = ssub.s32 %s22, 1
        %s186 = sand.u32 %s49, 1
        %s187 = scalar_lea.sflag [#allocation5], %s186
        %s188 = sand.u32 %s49, 1
        %s189 = smul.addr %s188, 16
        %s190 = scalar_lea.vmem [#allocation4], %s189
        // Predicated region
        $region29: #{tpu_custom_call.1} parent=27 // pred_check
          %p191 = pneg %p62
        $region30: #{tpu_custom_call.1} parent=27 // pred_check_branch
          %193 = sbr.rel (%p191) target = $region32
        $region31: #{tpu_custom_call.1} parent=27 // pred_region
          %194 = dma.done %s187, 256
        $region32: #{tpu_custom_call.1} parent=27 // pred_fallthru
          _
        %s195 = sand.u32 %s77, 1
        %s196 = scalar_lea.sflag [#allocation8], %s195
        %s197 = sand.u32 %s77, 1
        %s198 = smul.addr %s197, 16
        %s199 = scalar_lea.vmem [#allocation7], %s198
        // Predicated region
        $region33: #{tpu_custom_call.1} parent=27 // pred_check
          %p200 = pneg %p90
        $region34: #{tpu_custom_call.1} parent=27 // pred_check_branch
          %202 = sbr.rel (%p200) target = $region36
        $region35: #{tpu_custom_call.1} parent=27 // pred_region
          %203 = dma.done %s196, 256
        $region36: #{tpu_custom_call.1} parent=27 // pred_fallthru
          _
        %s204 = sand.u32 %s49, 1
        %s205 = scalar_lea.sflag [#allocation5], %s204
        %s206 = sand.u32 %s49, 1
        %s207 = smul.addr %s206, 16
        %s208 = scalar_lea.vmem [#allocation4], %s207
        %p209 = pneg %p62
        %p210 = pneg %p59
        %s211 = sand.u32 %s77, 1
        %s212 = scalar_lea.sflag [#allocation8], %s211
        %s213 = sand.u32 %s77, 1
        %s214 = smul.addr %s213, 16
        %s215 = scalar_lea.vmem [#allocation7], %s214
        %p216 = pneg %p90
        %p217 = pneg %p87
        %p218 = pneg %p116
        %p219 = pneg %p113
        %s220 = sand.u32 %s103, 1
        %s221 = scalar_lea.sflag [#allocation6], %s220
        %s222 = sand.u32 %s103, 1
        %s223 = smul.addr %s222, 8
        %s224 = scalar_lea.vmem [#allocation9], %s223
        %s225 = sadd.s32 %s31, %s32
        %s226 = smul.u32 2, %s225
        %s227 = sadd.s32 %s31, %s32
        %s228 = smul.u32 2, %s227
        %p229 = scmp.eq.s32.totalorder %s32, 0
        // Predicated region
        $region37: #{tpu_custom_call.1} parent=27 // pred_check
          %p230 = pneg %p229
        $region38: #{tpu_custom_call.1} parent=27 // pred_check_branch
          %232 = sbr.rel (%p230) target = $region40
        $region39: #{tpu_custom_call.1} parent=27 // pred_region
          %233 = vst [vmem:[%s224] sm:$0xff] 0.0
        $region40: #{tpu_custom_call.1} parent=27 // pred_fallthru
          _
        %s234 = sld [smem:[#allocation3]]
        %s235 = sld [smem:[#allocation3 + $0x1]]
        %v236 = vld [vmem:[%s190] sm:$0xff]
        %v237 = vld [vmem:[%s190 + $0x8] sm:$0xff]
        %v238 = vld [vmem:[%s199] sm:$0xff]
        %v239 = vld [vmem:[%s199 + $0x8] sm:$0xff]
        %v240 = vstv %s234
        %v241 = vsub.f32 %v236, %v240
        %v242 = vsub.f32 %v237, %v240
        %v243 = vstv %s235
        %v244 = vmul.f32 %v241, %v243
        %v245 = vmul.f32 %v242, %v243
        %v246 = vtanh.pop %v244
        %v247 = vtanh.pop %v245
        %v248 = vmul.f32 %v246, %v246
        %v249 = vmul.f32 %v247, %v247
        %v250 = vmul.f32 %v248, %v248
        %v251 = vmul.f32 %v249, %v249
        %v252 = vmul.f32 %v250, %v250
        %v253 = vmul.f32 %v251, %v251
        %v254 = vsub.f32 2.0, %v244
        %v255 = vsub.f32 2.0, %v245
        %v256 = vtanh.pop %v254
        %v257 = vtanh.pop %v255
        %v258 = vmul.f32 %v256, %v256
        %v259 = vmul.f32 %v257, %v257
        %v260 = vsub.f32 %v258, %v252
        %v261 = vsub.f32 %v259, %v253
        %v262 = vmul.f32 %v238, %v260
        %v263 = vmul.f32 %v239, %v261
        %v264 = vadd.f32 %v252, %v262
        %v265 = vadd.f32 %v253, %v263
        %v266 = vld [vmem:[%s224] sm:$0xff]
        %v267 = vadd.f32 %v264, %v265
        %v268 = vadd.f32 %v266, %v267
        %269 = vst [vmem:[%s224] sm:$0xff] %v268
        %s270 = sand.u32 %s103, 1
        %s271 = scalar_lea.sflag [#allocation6], %s270
        %s272 = sand.u32 %s103, 1
        %s273 = smul.addr %s272, 8
        %s274 = scalar_lea.vmem [#allocation9], %s273
        // Predicated region
        $region41: #{tpu_custom_call.1} parent=27 // pred_check
          %p275 = pneg %p113
        $region42: #{tpu_custom_call.1} parent=27 // pred_check_branch
          %277 = sbr.rel (%p275) target = $region44
        $region43: #{tpu_custom_call.1} parent=27 // pred_region
          %s279 = ssub.s32 128, 128
          %280 = vsyncadd %s271, %s279
          %s281 = smul.addr %s31, 128
          %s282 = scalar_lea.hbm %s3, %s281
          %s284 = sshll.u32 %s274, 4
          %s285 = int_to_ptr.vmem [resolvable:$true] %s284
          %287 = dma.vmem_to_hbm [thread:$0]  %s285, 128, %s282, %s271
        $region44: #{tpu_custom_call.1} parent=27 // pred_fallthru
          _
      $region28: #{tpu_custom_call.1} parent=5 // pred_fallthru
        _
      %p288 = scmp.le.s32.totalorder 2, %s22
      // Predicated region
      $region45: #{tpu_custom_call.1} parent=5 // pred_check
        %p289 = pneg %p288
      $region46: #{tpu_custom_call.1} parent=5 // pred_check_branch
        %291 = sbr.rel (%p289) target = $region48
      $region47: #{tpu_custom_call.1} parent=5 // pred_region
        %s292 = ssub.s32 %s22, 2
        // Predicated region
        $region49: #{tpu_custom_call.1} parent=47 // pred_check
          %p293 = pneg %p119
        $region50: #{tpu_custom_call.1} parent=47 // pred_check_branch
          %295 = sbr.rel (%p293) target = $region52
        $region51: #{tpu_custom_call.1} parent=47 // pred_region
          %s296 = sand.u32 %s104, 1
          %s297 = scalar_lea.sflag [#allocation6], %s296
          %s298 = sand.u32 %s104, 1
          %s299 = smul.addr %s298, 8
          %s300 = scalar_lea.vmem [#allocation9], %s299
          %301 = dma.done %s297, 128
        $region52: #{tpu_custom_call.1} parent=47 // pred_fallthru
          _
      $region48: #{tpu_custom_call.1} parent=5 // pred_fallthru
        _
    $region6: #{tpu_custom_call.1} parent=1 // loop_footer
      %s26 = sadd.s32 1, %s22
    $region7: #{tpu_custom_call.1} parent=1 // loop_footer_branch
      %21 = sbr.rel target = $region3
    $region8: #{tpu_custom_call.1} parent=1 // loop_exit
      _
    %302 = vsyncpa [#allocation5], 1
    %s303 = scalar_lea.sflag [#allocation5], 1
    %304 = vsyncpa %s303, 1
    %305 = vsyncpa [#allocation8], 1
    %s306 = scalar_lea.sflag [#allocation8], 1
    %307 = vsyncpa %s306, 1
    %308 = vsyncpa [#allocation6], 1
    %s309 = scalar_lea.sflag [#allocation6], 1
    %310 = vsyncpa %s309, 1

</llo_original>
